<compile_context>
chip_gen: v6e
topology: v6e:2x2x1
jax: 0.10.0
libtpu: 0.0.40
codegen_flags: <defaults>
</compile_context>

<pallas_src>
import jax
import jax.numpy as jnp
from jax.experimental import pallas as pl
from jax.experimental.pallas import tpu as pltpu

_LANES = 128      # lane width: last dim of every block
_SUBLANES = 8     # f32 sublane granularity


def _linreg_kernel(wb_ref, x_ref, o_ref):
    # wb_ref: (2,) f32 in SMEM -> [weight, bias].
    # x_ref / o_ref: lane-dense (rows, 128) f32 tiles in VMEM.
    # out = x * w + b  (exactly nn.Linear(1, 1) semantics), pure VPU FMA.
    w = wb_ref[0]
    b = wb_ref[1]
    o_ref[...] = x_ref[...] * w + b


def linear_regression_forward(x, weight, bias, *, block_rows=512):
    """x: (N, 1) f32, weight: (1, 1) f32, bias: (1,) f32 -> (N, 1) f32."""
    n = x.shape[0]

    # Pack the two scalars into a single SMEM operand (one fewer operand,
    # less SMEM padding, less fixed per-call overhead).
    wb = jnp.concatenate([weight.reshape(-1), bias.reshape(-1)]).astype(jnp.float32)

    # Lane-dense layout: flatten (N, 1) -> (rows_p, 128).  Padding values are
    # irrelevant (no reductions); we slice them off after the kernel.
    rows = pl.cdiv(n, _LANES)
    if rows <= block_rows:
        rows_p = max(_SUBLANES, pl.cdiv(rows, _SUBLANES) * _SUBLANES)
        grid_rows = None
    else:
        rows_p = pl.cdiv(rows, block_rows) * block_rows
        grid_rows = rows_p // block_rows

    n_pad = rows_p * _LANES
    x_flat = jnp.pad(x.reshape(-1).astype(jnp.float32), (0, n_pad - n))
    x2d = x_flat.reshape(rows_p, _LANES)

    if grid_rows is None:
        # Small input: single grid-less invocation, whole slab resident in
        # VMEM -> no per-step pipeline machinery.
        out2d = pl.pallas_call(
            _linreg_kernel,
            out_shape=jax.ShapeDtypeStruct((rows_p, _LANES), jnp.float32),
            in_specs=[
                pl.BlockSpec(memory_space=pltpu.MemorySpace.SMEM),  # [w, b]
                pl.BlockSpec(memory_space=pltpu.MemorySpace.VMEM),  # X slab
            ],
            out_specs=pl.BlockSpec(memory_space=pltpu.MemorySpace.VMEM),
        )(wb, x2d)
    else:
        # Large input: lane-dense (block_rows, 128) tiles over the row axis.
        # block_rows=512 f32 -> 256 KiB per buffer; with double buffering of
        # in+out this stays far under v7x's 64 MiB VMEM.  The row axis is
        # "parallel" so Mosaic can shard it across v7x's two TensorCores.
        out2d = pl.pallas_call(
            _linreg_kernel,
            out_shape=jax.ShapeDtypeStruct((rows_p, _LANES), jnp.float32),
            grid=(grid_rows,),
            in_specs=[
                pl.BlockSpec(memory_space=pltpu.MemorySpace.SMEM),      # [w, b]
                pl.BlockSpec((block_rows, _LANES), lambda i: (i, 0)),   # X tile
            ],
            out_specs=pl.BlockSpec((block_rows, _LANES), lambda i: (i, 0)),
            compiler_params=pltpu.CompilerParams(
                dimension_semantics=("parallel",)
            ),
        )(wb, x2d)

    return out2d.reshape(-1)[:n].reshape(n, 1)


if __name__ == "__main__":
    key = jax.random.PRNGKey(0)
    k_w, k_b = jax.random.split(key)

    # Input exactly like the reference script: X = unsqueeze(linspace(-1, 1, 100), 1)
    x = jnp.expand_dims(jnp.linspace(-1.0, 1.0, 100, dtype=jnp.float32), axis=1)

    # nn.Linear(1, 1) parameter shapes: weight (1, 1), bias (1,),
    # uniform(-1, 1) since bound = 1/sqrt(in_features) = 1.
    weight = jax.random.uniform(k_w, (1, 1), jnp.float32, minval=-1.0, maxval=1.0)
    bias = jax.random.uniform(k_b, (1,), jnp.float32, minval=-1.0, maxval=1.0)

    # Small path (grid-less, whole slab in VMEM) -- the spec's N=100.
    out = jax.block_until_ready(linear_regression_forward(x, weight, bias))
    ref = x @ weight.T + bias
    assert out.shape == (100, 1)
    assert jnp.allclose(out, ref, atol=1e-6, rtol=1e-6)

    # Also exercise the tiled (gridded, parallel) path at a small size by
    # shrinking block_rows: N=4096 -> 32 rows of 128 lanes, grid=(4,).
    x_big = jnp.expand_dims(
        jnp.linspace(-1.0, 1.0, 4096, dtype=jnp.float32), axis=1
    )
    out_big = jax.block_until_ready(
        linear_regression_forward(x_big, weight, bias, block_rows=8)
    )
    ref_big = x_big @ weight.T + bias
    assert out_big.shape == (4096, 1)
    assert jnp.allclose(out_big, ref_big, atol=1e-6, rtol=1e-6)

    print("KERNEL_OK")
</pallas_src>

<mosaic_0001>
module attributes {stable_mosaic.version = 11 : i64} {
  func.func @_linreg_kernel(%arg0: memref<2xf32, #tpu.memory_space<smem>>, %arg1: memref<8x128xf32, #tpu.memory_space<vmem>>, %arg2: memref<8x128xf32, #tpu.memory_space<vmem>>) attributes {dimension_semantics = [], scalar_prefetch = 0 : i64, scratch_operands = 0 : i64, tpu.core_type = #tpu.core_type<tc>} {
    %c0 = arith.constant 0 : index
    %0 = memref.load %arg0[%c0] : memref<2xf32, #tpu.memory_space<smem>>
    %c1 = arith.constant 1 : index
    %1 = memref.load %arg0[%c1] : memref<2xf32, #tpu.memory_space<smem>>
    %c0_0 = arith.constant 0 : index
    %c0_1 = arith.constant 0 : index
    %2 = vector.load %arg1[%c0_0, %c0_1] : memref<8x128xf32, #tpu.memory_space<vmem>>, vector<8x128xf32>
    %3 = vector.broadcast %0 : f32 to vector<8x128xf32>
    %4 = arith.mulf %2, %3 : vector<8x128xf32>
    %5 = vector.broadcast %1 : f32 to vector<8x128xf32>
    %6 = arith.addf %4, %5 : vector<8x128xf32>
    %c0_2 = arith.constant 0 : index
    %c0_3 = arith.constant 0 : index
    %7 = vector.load %arg2[%c0_2, %c0_3] : memref<8x128xf32, #tpu.memory_space<vmem>>, vector<8x128xf32>
    tpu.vector_store %arg2[%c0_2, %c0_3], %6 {strides = array<i32>} : memref<8x128xf32, #tpu.memory_space<vmem>>, vector<8x128xf32>,
    return
  }
}

</mosaic_0001>

<llo_original>
// kernel: tpu_custom_call.1
$region0: #{tpu_custom_call.1}
  #allocation0 [shape = 'u32[]', space=smem, size = 0x4, offset = 0x4, fixed_abs, tag = 'smem constant byte address 0x4 - core index']
  #allocation1 [shape = 'u32[144,128]{1,0:T(1,128)}', space=vmem, size = 0x12000, scoped, tag = 'internal scratch']
  %s0 = inlined_call_operand.hbm [shape: f32[2], index: 0, kind: input, shape index: {}]
  %s1 = inlined_call_operand.hbm [shape: f32[8,128], index: 1, kind: input, shape index: {}]
  %s2 = inlined_call_operand.hbm [shape: f32[8,128], index: 2, kind: output, shape index: {}]
  %s3 = sld [smem:[#allocation0]]
  $region26: #{tpu_custom_call.1} parent=0
    _
  %s5 = ssub.s32 1, %s3
  %s6 = scalar_select 0, %s5, %s3
  $region1: #{tpu_custom_call.1} parent=0
    #allocation2 [shape = 'u8[512]{0}', space=smem, size = 0x200, scoped, tag = 'input window, operand 0, single buffered']
    #allocation3 [shape = 's32[1]{0}', space=sflag, size = 0x4, scoped, tag = 'scoped memory for tpu_custom_call.1']
    #allocation4 [shape = 's32[1]{0}', space=sflag, size = 0x4, scoped, tag = 'scoped memory for tpu_custom_call.1']
    #allocation5 [shape = 's32[1]{0}', space=sflag, size = 0x4, scoped, tag = 'scoped memory for tpu_custom_call.1']
    #allocation6 [shape = 'u8[4096]{0}', space=vmem, size = 0x1000, scoped, tag = 'input window, operand 1, single buffered']
    #allocation7 [shape = 'u8[4096]{0}', space=vmem, size = 0x1000, scoped, tag = 'output window, operand 0, single buffered']
    %7 = vsyncpa [#allocation5], 0
    %8 = vsyncpa [#allocation3], 0
    %9 = vsyncpa [#allocation4], 0
    // Predicated region
    $region2: #{tpu_custom_call.1} parent=1 // pred_check
      _
    $region3: #{tpu_custom_call.1} parent=1 // pred_check_branch
      %11 = sbr.rel (0) target = $region5
    $region4: #{tpu_custom_call.1} parent=1 // pred_region
      %s13 = ssub.s32 16, 16
      %14 = vsyncadd [#allocation5], %s13
      %17 = dma.hbm_to_smem %s0, 16, [#allocation2], [#allocation5]
    $region5: #{tpu_custom_call.1} parent=1 // pred_fallthru
      _
    // Predicated region
    $region6: #{tpu_custom_call.1} parent=1 // pred_check
      _
    $region7: #{tpu_custom_call.1} parent=1 // pred_check_branch
      %19 = sbr.rel (0) target = $region9
    $region8: #{tpu_custom_call.1} parent=1 // pred_region
      %s21 = ssub.s32 128, 128
      %22 = vsyncadd [#allocation3], %s21
      %s24 = sshll.u32 [#allocation6], 4
      %s25 = int_to_ptr.vmem [resolvable:$true] %s24
      %27 = dma.hbm_to_vmem [thread:$0]  %s1, 128, %s25, [#allocation3]
    $region9: #{tpu_custom_call.1} parent=1 // pred_fallthru
      _
    // Predicated region
    $region10: #{tpu_custom_call.1} parent=1 // pred_check
      _
    $region11: #{tpu_custom_call.1} parent=1 // pred_check_branch
      %29 = sbr.rel (0) target = $region13
    $region12: #{tpu_custom_call.1} parent=1 // pred_region
      %30 = dma.done [#allocation5], 16
    $region13: #{tpu_custom_call.1} parent=1 // pred_fallthru
      _
    // Predicated region
    $region14: #{tpu_custom_call.1} parent=1 // pred_check
      _
    $region15: #{tpu_custom_call.1} parent=1 // pred_check_branch
      %32 = sbr.rel (0) target = $region17
    $region16: #{tpu_custom_call.1} parent=1 // pred_region
      %33 = dma.done [#allocation3], 128
    $region17: #{tpu_custom_call.1} parent=1 // pred_fallthru
      _
    %34 = sfence
    %s35 = sld [smem:[#allocation2]]
    %s36 = sld [smem:[#allocation2 + $0x1]]
    %v37 = vld [vmem:[#allocation6] sm:$0xff]
    %v38 = vstv %s35
    %v39 = vmul.f32 %v37, %v38
    %v40 = vstv %s36
    %v41 = vadd.f32 %v39, %v40
    %42 = vst [vmem:[#allocation7] sm:$0xff] %v41
    // Predicated region
    $region18: #{tpu_custom_call.1} parent=1 // pred_check
      _
    $region19: #{tpu_custom_call.1} parent=1 // pred_check_branch
      %44 = sbr.rel (0) target = $region21
    $region20: #{tpu_custom_call.1} parent=1 // pred_region
      %s46 = ssub.s32 128, 128
      %47 = vsyncadd [#allocation4], %s46
      %s49 = sshll.u32 [#allocation7], 4
      %s50 = int_to_ptr.vmem [resolvable:$true] %s49
      %52 = dma.vmem_to_hbm [thread:$0]  %s50, 128, %s2, [#allocation4]
    $region21: #{tpu_custom_call.1} parent=1 // pred_fallthru
      _
    // Predicated region
    $region22: #{tpu_custom_call.1} parent=1 // pred_check
      _
    $region23: #{tpu_custom_call.1} parent=1 // pred_check_branch
      %54 = sbr.rel (0) target = $region25
    $region24: #{tpu_custom_call.1} parent=1 // pred_region
      %55 = dma.done [#allocation4], 128
    $region25: #{tpu_custom_call.1} parent=1 // pred_fallthru
      _
    %56 = vsyncpa [#allocation3], 1
    %57 = vsyncpa [#allocation4], 1
    %58 = vsyncpa [#allocation5], 1

</llo_original>
